<compile_context>
chip_gen: v6e
topology: v6e:2x2x1
jax: 0.10.0
libtpu: 0.0.40
codegen_flags: <defaults>
</compile_context>

<pallas_src>
import functools

import jax
import jax.numpy as jnp
from jax.experimental import pallas as pl
from jax.experimental.pallas import tpu as pltpu


# ----------------------------------------------------------------------------
# Kernel: per-split partial sums of [w*log(p), w*n_agg, w] over the batch.
# ----------------------------------------------------------------------------
def _partial_sums_kernel(*refs, tb, total_rows, tiles_per_split, n_neg,
                         adversarial, adversarial_temperature, subsampling,
                         needs_mask):
    if subsampling:
        sim_ref, w_ref, out_ref = refs
    else:
        sim_ref, out_ref = refs
        w_ref = None

    c = pl.program_id(0)          # split index (one per TensorCore on v7x)
    i = pl.program_id(1)          # tile index within the split ("arbitrary")

    # Resident VMEM output block doubles as the accumulator (no SMEM RMW).
    @pl.when(i == 0)
    def _():
        out_ref[...] = jnp.zeros_like(out_ref)

    sim = sim_ref[...].astype(jnp.float32)            # (tb, K) f32
    p = sim[:, 0:1]                                   # positive scores
    log_p = jnp.log(p)

    if adversarial:
        # softmax over negatives only: mask column 0 to -inf before the max so
        # a dominant positive score can never zero the denominator.
        if adversarial_temperature == 1.0:
            logits = sim
        else:
            logits = sim * adversarial_temperature
        col = jax.lax.broadcasted_iota(jnp.int32, sim.shape, 1)
        neg_logits = jnp.where(col >= 1, logits, -jnp.inf)
        m = jnp.max(neg_logits, axis=1, keepdims=True)
        e = jnp.exp(neg_logits - m)                   # column 0 -> exp(-inf) = 0
        denom = jnp.sum(e, axis=1, keepdims=True)
        numer = jnp.sum(e * sim, axis=1, keepdims=True)
        n_agg = numer / denom                         # one divide per row
    else:
        n_agg = (jnp.sum(sim, axis=1, keepdims=True) - p) * (1.0 / n_neg)

    if subsampling:
        wt = w_ref[...].astype(jnp.float32)           # (tb, 1)
        t_logp, t_nagg, t_w = wt * log_p, wt * n_agg, wt
    else:
        t_logp, t_nagg, t_w = log_p, n_agg, jnp.ones_like(p)

    if needs_mask:
        # Zero padded tail rows (partial last tile / clamped duplicate tiles)
        # so garbage / NaN never reaches the accumulator.
        row = jax.lax.broadcasted_iota(jnp.int32, (tb, 1), 0)
        start = (c * tiles_per_split + i) * tb
        valid = (row + start) < total_rows
        t_logp = jnp.where(valid, t_logp, 0.0)
        t_nagg = jnp.where(valid, t_nagg, 0.0)
        t_w = jnp.where(valid, t_w, 0.0)

    # One packed (tb, 3) sublane reduction instead of three separate full
    # reductions; accumulate directly into the resident output block.
    packed = jnp.concatenate([t_logp, t_nagg, t_w], axis=1)         # (tb, 3)
    out_ref[...] += jnp.sum(packed, axis=0, keepdims=True)[None]    # (1, 1, 3)


# ----------------------------------------------------------------------------
# Host-side helpers.
# ----------------------------------------------------------------------------
def _tpu_topology():
    """Best-effort (tensorcores_per_chip, use_core_parallel, vmem_bytes)."""
    kind = ""
    try:
        kind = jax.devices()[0].device_kind.lower()
    except Exception:
        pass
    vmem = None
    try:
        vmem = int(pltpu.get_tpu_info().vmem_capacity_bytes)
    except Exception:
        vmem = None
    num_cores, core_parallel = 1, False
    if "v7" in kind:
        num_cores, core_parallel = 2, True        # v7x: 2 TCs, CORE_PARALLEL split
    elif ("v4" in kind) or ("v5p" in kind):
        num_cores, core_parallel = 2, False       # classic megacore: plain parallel
    if vmem is None or vmem <= 0:
        big = ("v4" in kind) or ("v5" in kind) or ("v6" in kind)
        vmem = 128 * 1024 * 1024 if big else 64 * 1024 * 1024
    if "v7" in kind:
        vmem = min(vmem, 64 * 1024 * 1024)        # per-TensorCore VMEM on v7x
    return num_cores, core_parallel, vmem


def _choose_tiling(b, k, itemsize, adversarial, subsampling, budget_bytes,
                   block_rows, max_splits):
    """Returns (tb, n_splits, tiles_per_split, n_tiles, needs_mask)."""
    if block_rows is not None:
        tb = max(16, (int(block_rows) // 16) * 16)
    else:
        k_lanes = -(-k // 128) * 128                          # lane padding of K
        per_row = 2 * k_lanes * itemsize                      # double-buffered sim tile
        per_row += (4 if adversarial else 2) * k_lanes * 4    # f32 in-kernel temporaries
        if subsampling:
            per_row += 2 * 128 * 4                            # double-buffered (tb,1) weight
        per_row += 8 * 128 * 4                                # lane-padded per-row f32 columns
        tb = max(16, (budget_bytes // per_row) // 16 * 16)
    if tb >= b:
        return b, 1, 1, 1, False                              # single full block
    nt = -(-b // tb)                                          # total row tiles
    ns = max(1, min(max_splits, nt))
    tps = -(-nt // ns)
    needs_mask = (ns * tps * tb) != b
    return tb, ns, tps, nt, needs_mask


def sccf_loss2(similarity, subsampling_weight=None, *,
               negative_adversarial_sampling=True,
               adversarial_temperature=1.0,
               subsampling=True,
               block_rows=None,
               num_splits=None):
    """Pallas forward of SCCF_loss2.  Returns (loss, loss_record)."""
    similarity = jnp.asarray(similarity)
    if similarity.dtype != jnp.bfloat16:
        similarity = similarity.astype(jnp.float32)   # bf16 streams as bf16
    b, k = similarity.shape
    n_neg = k - 1
    adversarial = bool(negative_adversarial_sampling)
    subsampling = bool(subsampling)

    num_cores, core_parallel, vmem_bytes = _tpu_topology()
    vmem_limit = int(min(3 * vmem_bytes // 4, 96 * 1024 * 1024))
    budget = (7 * vmem_limit) // 10                    # working-set target

    max_splits = int(num_splits) if num_splits is not None else num_cores
    tb, ns, tps, nt, needs_mask = _choose_tiling(
        b, k, similarity.dtype.itemsize, adversarial, subsampling,
        budget, block_rows, max_splits)

    kernel = functools.partial(
        _partial_sums_kernel, tb=tb, total_rows=b, tiles_per_split=tps,
        n_neg=n_neg, adversarial=adversarial,
        adversarial_temperature=float(adversarial_temperature),
        subsampling=subsampling, needs_mask=needs_mask)

    if ns * tps == nt:
        def blk_map(c, i):
            return (c * tps + i, 0)
    else:
        last = nt - 1

        def blk_map(c, i):
            # Ragged split: clamp to the last real tile; the row mask zeroes
            # any duplicated / beyond-B contribution.
            return (jnp.minimum(c * tps + i, last), 0)

    in_specs = [pl.BlockSpec((tb, k), blk_map)]
    args = [similarity]
    if subsampling:
        # Only stream the (lane-padded) weight column when it is actually used.
        w2d = jnp.asarray(subsampling_weight, jnp.float32).reshape(b, 1)
        in_specs.append(pl.BlockSpec((tb, 1), blk_map))
        args.append(w2d)

    grid_spec = pltpu.PrefetchScalarGridSpec(
        num_scalar_prefetch=0,
        grid=(ns, tps),
        in_specs=in_specs,
        out_specs=pl.BlockSpec((1, 1, 3), lambda c, i: (c, 0, 0)),
    )

    split_sem = pltpu.CORE_PARALLEL if (core_parallel and ns > 1) else "parallel"
    sums = pl.pallas_call(
        kernel,
        grid_spec=grid_spec,
        out_shape=jax.ShapeDtypeStruct((ns, 1, 3), jnp.float32),
        compiler_params=pltpu.CompilerParams(
            dimension_semantics=(split_sem, "arbitrary"),
            vmem_limit_bytes=vmem_limit),
    )(*args)

    # Finalize the three scalars from the per-split partial sums (trivial XLA).
    s = jnp.sum(sums, axis=(0, 1))            # [sum(w*log p), sum(w*n_agg), sum(w)]
    pos_loss = -(s[0] / s[2])
    neg_loss = jnp.log(s[1] / s[2])
    n_pos = 1
    loss = (n_pos / (n_pos + n_neg)) * pos_loss + (n_neg / (n_pos + n_neg)) * neg_loss

    # TODO(synk): PyTorch returns loss_record via .item() (host floats); we keep
    # traced jnp scalars so the whole forward stays jittable.
    loss_record = {
        'hard_positive_sample_loss': pos_loss,
        'hard_negative_sample_loss': neg_loss,
        'hard_loss': loss,
    }
    return loss, loss_record


def _reference(similarity, subsampling_weight, *, negative_adversarial_sampling,
               adversarial_temperature, subsampling):
    """Pure-JAX transcription of the PyTorch forward (for verification)."""
    p_score, n_score = similarity[:, 0], similarity[:, 1:]
    n_pos, n_neg = 1, similarity.shape[-1] - 1
    log_p_score = jnp.log(p_score)
    if negative_adversarial_sampling:
        sm = jax.nn.softmax(n_score * adversarial_temperature, axis=1)
        n_score = (sm * n_score).sum(axis=1)
    else:
        n_score = n_score.mean(axis=-1)
    if subsampling:
        pos = -((subsampling_weight * log_p_score).sum() / subsampling_weight.sum())
        neg = jnp.log((subsampling_weight * n_score).sum() / subsampling_weight.sum())
    else:
        pos = -log_p_score.mean()
        neg = jnp.log(n_score.mean())
    loss = n_pos / (n_pos + n_neg) * pos + n_neg / (n_pos + n_neg) * neg
    return loss, pos, neg


if __name__ == "__main__":
    key = jax.random.PRNGKey(0)

    # (B, K, block_rows, num_splits, which adv/sub/T combos to test)
    configs = [
        (8,   16, None, None, "all"),   # single full block
        (300, 33, 64,   None, "all"),   # multi-tile, masked partial tail
        (256, 20, 64,   2,    "some"),  # forced 2-way split, even tile count
        (300, 20, 64,   2,    "some"),  # forced 2-way split, ragged (clamp + mask)
    ]

    ok = True
    for (B, K, br, nsp, combos) in configs:
        ks, kw = jax.random.split(jax.random.fold_in(key, B * 1000 + K))
        similarity = jax.random.uniform(ks, (B, K), jnp.float32,
                                        minval=0.1, maxval=1.0)
        weight = jax.random.uniform(kw, (B,), jnp.float32,
                                    minval=0.5, maxval=1.5)
        if combos == "all":
            cases = [(a, s, 1.0) for a in (True, False) for s in (True, False)]
        else:
            cases = [(True, True, 0.5), (False, False, 1.0)]
        for adv, sub, temp in cases:
            loss, rec = sccf_loss2(similarity, weight,
                                   negative_adversarial_sampling=adv,
                                   adversarial_temperature=temp,
                                   subsampling=sub,
                                   block_rows=br, num_splits=nsp)
            loss = jax.block_until_ready(loss)
            ref_loss, ref_pos, ref_neg = _reference(
                similarity, weight,
                negative_adversarial_sampling=adv,
                adversarial_temperature=temp,
                subsampling=sub)
            ok &= bool(jnp.allclose(loss, ref_loss, rtol=1e-4, atol=1e-5))
            ok &= bool(jnp.allclose(rec['hard_positive_sample_loss'],
                                    ref_pos, rtol=1e-4, atol=1e-5))
            ok &= bool(jnp.allclose(rec['hard_negative_sample_loss'],
                                    ref_neg, rtol=1e-4, atol=1e-5))

    # bf16 pass-through (half the HBM bytes); compare vs the f32 reference
    # evaluated on the same bf16-rounded inputs.
    ksim, kwt = jax.random.split(jax.random.fold_in(key, 7))
    sim_bf = jax.random.uniform(ksim, (256, 20), jnp.float32,
                                minval=0.1, maxval=1.0).astype(jnp.bfloat16)
    wt = jax.random.uniform(kwt, (256,), jnp.float32, minval=0.5, maxval=1.5)
    loss, _ = sccf_loss2(sim_bf, wt, negative_adversarial_sampling=True,
                         adversarial_temperature=1.0, subsampling=True,
                         block_rows=64)
    loss = jax.block_until_ready(loss)
    ref_loss, _, _ = _reference(sim_bf.astype(jnp.float32), wt,
                                negative_adversarial_sampling=True,
                                adversarial_temperature=1.0, subsampling=True)
    ok &= bool(jnp.allclose(loss, ref_loss, rtol=1e-3, atol=1e-4))

    if ok:
        print("KERNEL_OK")
    else:
        raise SystemExit("mismatch vs reference")
</pallas_src>

<mosaic_0001>
module attributes {stable_mosaic.version = 11 : i64} {
  func.func @_partial_sums_kernel(%arg0: i32, %arg1: i32, %arg2: memref<8x16xf32, #tpu.memory_space<vmem>>, %arg3: memref<8x1xf32, #tpu.memory_space<vmem>>, %arg4: memref<1x1x3xf32, #tpu.memory_space<vmem>>) attributes {dimension_semantics = [#tpu.dimension_semantics<parallel>, #tpu.dimension_semantics<arbitrary>], iteration_bounds = array<i64: 1, 1>, scalar_prefetch = 0 : i64, scratch_operands = 0 : i64, tpu.core_type = #tpu.core_type<tc>, window_params = [{transform_indices = @transform_0, window_bounds = array<i64: 8, 16>}, {transform_indices = @transform_1, window_bounds = array<i64: 8, 1>}, {transform_indices = @transform_2, window_bounds = array<i64: 1, 1, 3>}]} {
    %c0_i32 = arith.constant 0 : i32
    %0 = arith.cmpi eq, %arg1, %c0_i32 : i32
    %1 = arith.extui %0 : i1 to i32
    %c0_i32_0 = arith.constant 0 : i32
    %2 = arith.cmpi ne, %1, %c0_i32_0 : i32
    scf.if %2 {
      %cst_14 = arith.constant 0.000000e+00 : f32
      %32 = vector.broadcast %cst_14 : f32 to vector<1x1x3xf32>
      %c0_15 = arith.constant 0 : index
      %c0_16 = arith.constant 0 : index
      %c0_17 = arith.constant 0 : index
      %33 = vector.load %arg4[%c0_15, %c0_16, %c0_17] : memref<1x1x3xf32, #tpu.memory_space<vmem>>, vector<1x1x3xf32>
      tpu.vector_store %arg4[%c0_15, %c0_16, %c0_17], %32 {strides = array<i32>} : memref<1x1x3xf32, #tpu.memory_space<vmem>>, vector<1x1x3xf32>,
    } else {
    }
    %c0 = arith.constant 0 : index
    %c0_1 = arith.constant 0 : index
    %3 = vector.load %arg2[%c0, %c0_1] : memref<8x16xf32, #tpu.memory_space<vmem>>, vector<8x16xf32>
    %4 = vector.extract_strided_slice %3 {offsets = [0, 0], sizes = [8, 1], strides = [1, 1]} : vector<8x16xf32> to vector<8x1xf32>
    %5 = math.log %4 : vector<8x1xf32>
    %6 = tpu.iota {dimensions = array<i32: 1>} : vector<8x16xi32>
    %c1_i32 = arith.constant 1 : i32
    %7 = vector.broadcast %c1_i32 : i32 to vector<8x16xi32>
    %8 = arith.cmpi sge, %6, %7 : vector<8x16xi32>
    %cst = arith.constant 0xFF800000 : f32
    %9 = vector.broadcast %cst : f32 to vector<8x16xf32>
    %10 = arith.select %8, %3, %9 : vector<8x16xi1>, vector<8x16xf32>
    %cst_2 = arith.constant dense<0xFF800000> : vector<8xf32>
    %11 = vector.multi_reduction <maximumf>, %10, %cst_2 [1] : vector<8x16xf32> to vector<8xf32>
    %12 = vector.shape_cast %11 : vector<8xf32> to vector<8x1xf32>
    %13 = vector.broadcast %12 : vector<8x1xf32> to vector<8x16xf32>
    %14 = arith.subf %10, %13 : vector<8x16xf32>
    %15 = math.exp %14 : vector<8x16xf32>
    %cst_3 = arith.constant dense<0.000000e+00> : vector<8xf32>
    %16 = vector.multi_reduction <add>, %15, %cst_3 [1] : vector<8x16xf32> to vector<8xf32>
    %17 = vector.shape_cast %16 : vector<8xf32> to vector<8x1xf32>
    %18 = arith.mulf %15, %3 : vector<8x16xf32>
    %cst_4 = arith.constant dense<0.000000e+00> : vector<8xf32>
    %19 = vector.multi_reduction <add>, %18, %cst_4 [1] : vector<8x16xf32> to vector<8xf32>
    %20 = vector.shape_cast %19 : vector<8xf32> to vector<8x1xf32>
    %21 = arith.divf %20, %17 : vector<8x1xf32>
    %c0_5 = arith.constant 0 : index
    %c0_6 = arith.constant 0 : index
    %22 = vector.load %arg3[%c0_5, %c0_6] : memref<8x1xf32, #tpu.memory_space<vmem>>, vector<8x1xf32>
    %23 = arith.mulf %22, %5 : vector<8x1xf32>
    %24 = arith.mulf %22, %21 : vector<8x1xf32>
    %25 = tpu.concatenate %23, %24, %22 in 1 : vector<8x1xf32>, vector<8x1xf32>, vector<8x1xf32> -> vector<8x3xf32>
    %c0_7 = arith.constant 0 : index
    %c0_8 = arith.constant 0 : index
    %c0_9 = arith.constant 0 : index
    %26 = vector.load %arg4[%c0_7, %c0_8, %c0_9] : memref<1x1x3xf32, #tpu.memory_space<vmem>>, vector<1x1x3xf32>
    %cst_10 = arith.constant dense<0.000000e+00> : vector<3xf32>
    %27 = vector.multi_reduction <add>, %25, %cst_10 [0] : vector<8x3xf32> to vector<3xf32>
    %28 = vector.shape_cast %27 : vector<3xf32> to vector<1x3xf32>
    %29 = vector.shape_cast %28 : vector<1x3xf32> to vector<1x1x3xf32>
    %30 = arith.addf %26, %29 : vector<1x1x3xf32>
    %c0_11 = arith.constant 0 : index
    %c0_12 = arith.constant 0 : index
    %c0_13 = arith.constant 0 : index
    %31 = vector.load %arg4[%c0_11, %c0_12, %c0_13] : memref<1x1x3xf32, #tpu.memory_space<vmem>>, vector<1x1x3xf32>
    tpu.vector_store %arg4[%c0_11, %c0_12, %c0_13], %30 {strides = array<i32>} : memref<1x1x3xf32, #tpu.memory_space<vmem>>, vector<1x1x3xf32>,
    return
  }
  func.func @transform_0(%arg0: i32, %arg1: i32) -> (i32, i32) {
    %c1_i32 = arith.constant 1 : i32
    %0 = arith.muli %arg0, %c1_i32 : i32
    %1 = arith.addi %0, %arg1 : i32
    %c0_i32 = arith.constant 0 : i32
    %c0_i32_0 = arith.constant 0 : i32
    return %1, %c0_i32 : i32, i32
  }
  func.func @transform_1(%arg0: i32, %arg1: i32) -> (i32, i32) {
    %c1_i32 = arith.constant 1 : i32
    %0 = arith.muli %arg0, %c1_i32 : i32
    %1 = arith.addi %0, %arg1 : i32
    %c0_i32 = arith.constant 0 : i32
    %c0_i32_0 = arith.constant 0 : i32
    return %1, %c0_i32 : i32, i32
  }
  func.func @transform_2(%arg0: i32, %arg1: i32) -> (i32, i32, i32) {
    %c0_i32 = arith.constant 0 : i32
    %c0_i32_0 = arith.constant 0 : i32
    %c0_i32_1 = arith.constant 0 : i32
    return %arg0, %c0_i32, %c0_i32_0 : i32, i32, i32
  }
}

</mosaic_0001>

<llo_original>
// kernel: tpu_custom_call.1
$region0: #{tpu_custom_call.1}
  #allocation0 [shape = 'u32[]', space=smem, size = 0x4, offset = 0x4, fixed_abs, tag = 'smem constant byte address 0x4 - core index']
  #allocation1 [shape = 'u32[144,128]{1,0:T(1,128)}', space=vmem, size = 0x12000, scoped, tag = 'internal scratch']
  %s0 = inlined_call_operand.vmem [shape: f32[8,16], index: 0, kind: input, shape index: {}]
  %s1 = inlined_call_operand.vmem [shape: f32[8,1], index: 1, kind: input, shape index: {}]
  %s2 = inlined_call_operand.hbm [shape: f32[1,1,3], index: 2, kind: output, shape index: {}]
  %s3 = sld [smem:[#allocation0]]
  $region22: #{tpu_custom_call.1} parent=0
    _
  %s5 = ssub.s32 1, %s3
  %s6 = scalar_select 0, %s5, %s3
  $region1: #{tpu_custom_call.1} parent=0
    #allocation2 [shape = 'u8[512]{0}', space=vmem, size = 0x400, scoped, tag = 'output window, operand 0, single buffered']
    #allocation3 [shape = 's32[1]{0}', space=sflag, size = 0x4, scoped, tag = 'scoped memory for tpu_custom_call.1']
    %7 = vsyncpa [#allocation3], 0
    // Predicated region
    $region2: #{tpu_custom_call.1} parent=1 // pred_check
      _
    $region3: #{tpu_custom_call.1} parent=1 // pred_check_branch
      %9 = sbr.rel (0) target = $region5
    $region4: #{tpu_custom_call.1} parent=1 // pred_region
      %s10 = sadd.s32 0, 0
      %p11 = scmp.lt.s32.totalorder %s10, 0
      %s12 = scalar_select %p11, %s10, 0
      %s13 = smul.addr %s12, 8
      %s14 = scalar_lea.vmem %s0, %s13
      %s15 = sadd.s32 0, 0
    $region5: #{tpu_custom_call.1} parent=1 // pred_fallthru
      _
    // Predicated region
    $region6: #{tpu_custom_call.1} parent=1 // pred_check
      _
    $region7: #{tpu_custom_call.1} parent=1 // pred_check_branch
      %17 = sbr.rel (0) target = $region9
    $region8: #{tpu_custom_call.1} parent=1 // pred_region
      %s18 = sadd.s32 0, 0
      %p19 = scmp.lt.s32.totalorder %s18, 0
      %s20 = scalar_select %p19, %s18, 0
      %s21 = smul.addr %s20, 8
      %s22 = scalar_lea.vmem %s1, %s21
      %s23 = sadd.s32 0, 0
    $region9: #{tpu_custom_call.1} parent=1 // pred_fallthru
      _
    %s24 = sadd.s32 0, 0
    %p25 = scmp.lt.s32.totalorder %s24, 0
    %s26 = scalar_select %p25, %s24, 0
    %s27 = smul.addr %s26, 8
    %s28 = scalar_lea.vmem %s0, %s27
    %s29 = sadd.s32 0, 0
    %p30 = scmp.lt.s32.totalorder %s29, 0
    %s31 = scalar_select %p30, %s29, 0
    %s32 = smul.addr %s31, 8
    %s33 = scalar_lea.vmem %s1, %s32
    %s34 = sadd.s32 0, 0
    %p35 = scmp.lt.s32.totalorder %s34, 0
    %s36 = scalar_select %p35, %s34, 0
    %s37 = smul.addr %s36, 8
    %s38 = scalar_lea.vmem %s0, %s37
    %s39 = sadd.s32 0, 0
    %s40 = sadd.s32 0, 0
    %p41 = scmp.lt.s32.totalorder %s40, 0
    %s42 = scalar_select %p41, %s40, 0
    %s43 = smul.addr %s42, 8
    %s44 = scalar_lea.vmem %s1, %s43
    %s45 = sadd.s32 0, 0
    %p46 = scmp.eq.s32.totalorder 0, 0
    // Predicated region
    $region10: #{tpu_custom_call.1} parent=1 // pred_check
      %p47 = pneg %p46
    $region11: #{tpu_custom_call.1} parent=1 // pred_check_branch
      %49 = sbr.rel (%p47) target = $region13
    $region12: #{tpu_custom_call.1} parent=1 // pred_region
      %vm50 = vcmask 16384
      %51 = vst.msk [vmem:[#allocation2] sm:$0x1] %vm50, 0.0
    $region13: #{tpu_custom_call.1} parent=1 // pred_fallthru
      _
    %v52 = vld [vmem:[%s38] sm:$0xff]
    %v53 = vlog2.pop %v52
    %v54 = vmul.f32 %v53, 0.6931472
    %v55 = vlaneseq
    %v56 = vand.u32 %v55, 127
    %vm57 = vcmp.ge.s32.totalorder %v56, 1
    %v58 = vsel %vm57, %v52, -inf
    %vm59 = vcmask 130048
    %v60 = vsel %vm59, %v58, -inf
    %61 = vmax.xlane.f32.xlu0 %v60
    %v62 = vpop.xlane.xlu0 %61
    %v63 = vsub.f32 %v58, %v62
    %v64 = vmul.f32 %v63, 1.442695
    %v65 = vpow.pop %v64
    %v66 = vsel %vm59, %v65, 0.0
    %67 = vadd.xlane.f32.xlu0 %v66
    %v68 = vpop.xlane.xlu0 %67
    %v69 = vmul.f32 %v65, %v52
    %v70 = vsel %vm59, %v69, 0.0
    %71 = vadd.xlane.f32.xlu0 %v70
    %v72 = vpop.xlane.xlu0 %71
    %v73 = vrcp.pop %v68
    %v74 = vmul.f32 %v72, %v73
    %v75 = vld [vmem:[%s44] sm:$0xff]
    %v76 = vmul.f32 %v75, %v54
    %v77 = vmul.f32 %v75, %v74
    %79 = vrot.lane.b32.xlu0 %v77, 1
    %v80 = vpop.permute.xlu0 %79
    %83 = vrot.lane.b32.xlu0 %v75, 2
    %v84 = vpop.permute.xlu0 %83
    %vm86 = vcmask 7168
    %v87 = vsel %vm86, %v76, %v80
    %vm88 = vcmask 15360
    %v89 = vsel %vm88, %v87, %v84
    %v90 = vld [vmem:[#allocation2] sm:$0x1]
    %vm91 = vcmask 23552
    %v92 = vsel %vm91, %v89, 0.0
    %v93 = vrot.slane %v92, 4
    %v94 = vadd.f32 %v92, %v93
    %v95 = vrot.slane %v94, 2
    %v96 = vadd.f32 %v94, %v95
    %v97 = vrot.slane %v96, 1
    %v98 = vadd.f32 %v96, %v97
    %v99 = vadd.f32 %v90, %v98
    %vm100 = vcmask 16384
    %101 = vst.msk [vmem:[#allocation2] sm:$0x1] %vm100, %v99
    // Predicated region
    $region14: #{tpu_custom_call.1} parent=1 // pred_check
      _
    $region15: #{tpu_custom_call.1} parent=1 // pred_check_branch
      %103 = sbr.rel (0) target = $region17
    $region16: #{tpu_custom_call.1} parent=1 // pred_region
      %s105 = ssub.s32 16, 16
      %106 = vsyncadd [#allocation3], %s105
      %s108 = sshll.u32 [#allocation2], 4
      %s109 = int_to_ptr.vmem [resolvable:$true] %s108
      %111 = dma.vmem_to_hbm [thread:$0]  %s109, 16, %s2, [#allocation3]
    $region17: #{tpu_custom_call.1} parent=1 // pred_fallthru
      _
    // Predicated region
    $region18: #{tpu_custom_call.1} parent=1 // pred_check
      _
    $region19: #{tpu_custom_call.1} parent=1 // pred_check_branch
      %113 = sbr.rel (0) target = $region21
    $region20: #{tpu_custom_call.1} parent=1 // pred_region
      %114 = dma.done [#allocation3], 16
    $region21: #{tpu_custom_call.1} parent=1 // pred_fallthru
      _
    %115 = vsyncpa [#allocation3], 1

</llo_original>
